<compile_context>
chip_gen: v6e
topology: v6e:2x2x1
jax: 0.10.0
libtpu: 0.0.40
codegen_flags: <defaults>
</compile_context>

<pallas_src>
import jax
import jax.numpy as jnp
from jax.experimental import pallas as pl
from jax.experimental.pallas import tpu as pltpu

SMEM = pltpu.MemorySpace.SMEM


# ---------------------------------------------------------------------------
# Kernel 1: depth proxy (stand-in for DPTImageProcessor + DPTForDepthEstimation)
# TODO(synk): 'Intel/dpt-hybrid-midas' is a large pretrained ViT-hybrid depth
# network; only its I/O contract (NCHW image -> positive (N,1,h,w) depth) is
# reproduced here with a deterministic channel mix (MXU) + exp (EUP).
# ---------------------------------------------------------------------------
def _depth_kernel(img_ref, w_ref, depth_ref):
    # img_ref: (1, C, Hi*Wi), w_ref: (1, C)  ->  depth_ref: (1, 1, Hi*Wi)
    d = jnp.dot(w_ref[...], img_ref[0], preferred_element_type=jnp.float32)
    depth_ref[0] = jnp.exp(d)                       # strictly positive depth


def depth_proxy(img_flat, depth_w):
    n, c, hw = img_flat.shape
    w = depth_w.reshape(1, c).astype(jnp.float32)
    return pl.pallas_call(
        _depth_kernel,
        out_shape=jax.ShapeDtypeStruct((n, 1, hw), jnp.float32),
        grid=(n,),
        in_specs=[
            pl.BlockSpec((1, c, hw), lambda i: (i, 0, 0)),
            pl.BlockSpec((1, c), lambda i: (0, 0)),
        ],
        out_specs=pl.BlockSpec((1, 1, hw), lambda i: (i, 0, 0)),
        compiler_params=pltpu.CompilerParams(
            dimension_semantics=("parallel",)),
    )(img_flat, w)


# ---------------------------------------------------------------------------
# Kernel 2: fused  disp-normalize + bilinear resize (image & disp) + MPI head
# TODO(synk): the real MPIPredictor architecture/weights live in a checkpoint
# ('ckpt_path', num_planes) and are unknown; the stand-in head is a
# deterministic 1x1 conv over [image, disp] + sigmoid producing num_planes
# planes, implemented as MXU matmuls.
# ---------------------------------------------------------------------------
def _fused_kernel(img_ref, dep_ref, inv_ref, k_ref, w_ref, b_ref, o_ref):
    # img_ref : (1, C, Hi*Wi)   flattened source image
    # dep_ref : (1, 1, Hi*Wi)   raw depth from the proxy
    # inv_ref : (1,) SMEM       1 / max(depth) over the whole batch
    # k_ref   : (Hi*Wi, Ho*Wo)  exact bilinear align_corners=True resize matrix
    # w_ref   : (P, C+1)        MPI-head 1x1-conv weights
    # b_ref   : (P, 1)          MPI-head bias
    # o_ref   : (1, P, Ho*Wo)
    c = img_ref.shape[1]
    k = k_ref[...]

    # 2. disp = depth / max(depth)  (applied at low res; resize is linear)
    disp_lo = dep_ref[0] * inv_ref[0]                                  # (1, HiWi)

    # 3./4. exact bilinear resize, align_corners=True:  x_flat @ K   (MXU)
    img_hi = jnp.dot(img_ref[0], k, preferred_element_type=jnp.float32)   # (C, HoWo)
    disp_hi = jnp.dot(disp_lo, k, preferred_element_type=jnp.float32)     # (1, HoWo)

    # 5. MPI head stand-in: 1x1 conv over [image, disp] + bias + sigmoid
    w = w_ref[...]                                                     # (P, C+1)
    mixed = (jnp.dot(w[:, :c], img_hi, preferred_element_type=jnp.float32)
             + w[:, c:] * disp_hi                                      # (P,1)*(1,HoWo)
             + b_ref[...])                                             # (P, HoWo)
    o_ref[0] = jax.nn.sigmoid(mixed)


def fused_resize_mpi(img_flat, depth, inv_max, k, mpi_w, mpi_b):
    n, c, hw_in = img_flat.shape
    hw_out = k.shape[1]
    p = mpi_w.shape[0]
    w = mpi_w.astype(jnp.float32)
    b = mpi_b.reshape(p, 1).astype(jnp.float32)
    return pl.pallas_call(
        _fused_kernel,
        out_shape=jax.ShapeDtypeStruct((n, p, hw_out), jnp.float32),
        grid=(n,),
        in_specs=[
            pl.BlockSpec((1, c, hw_in), lambda i: (i, 0, 0)),
            pl.BlockSpec((1, 1, hw_in), lambda i: (i, 0, 0)),
            pl.BlockSpec(memory_space=SMEM),               # (1,) 1/max(depth)
            pl.BlockSpec((hw_in, hw_out), lambda i: (0, 0)),
            pl.BlockSpec((p, c + 1), lambda i: (0, 0)),
            pl.BlockSpec((p, 1), lambda i: (0, 0)),
        ],
        out_specs=pl.BlockSpec((1, p, hw_out), lambda i: (i, 0, 0)),
        compiler_params=pltpu.CompilerParams(
            dimension_semantics=("parallel",)),
    )(img_flat, depth, inv_max, k, w, b)


# ---------------------------------------------------------------------------
# Host-side helpers: exact bilinear (align_corners=True) resize matrices
# ---------------------------------------------------------------------------
def _interp_matrix(out_size, in_size):
    # (out_size, in_size) 1-D linear interpolation, align_corners=True
    # (same semantics as F.interpolate(mode='bilinear', align_corners=True)).
    if out_size == 1:
        src = jnp.zeros((1,), jnp.float32)
    else:
        src = jnp.arange(out_size, dtype=jnp.float32) * (
            (in_size - 1) / (out_size - 1))
    i0 = jnp.clip(jnp.floor(src).astype(jnp.int32), 0, in_size - 1)
    i1 = jnp.clip(i0 + 1, 0, in_size - 1)
    w1 = src - i0.astype(jnp.float32)
    w0 = 1.0 - w1
    rows = jnp.arange(out_size)
    r = jnp.zeros((out_size, in_size), jnp.float32)
    r = r.at[rows, i0].add(w0)
    r = r.at[rows, i1].add(w1)
    return r


def _bilinear_kron(in_h, in_w, out_h, out_w):
    # K[hi*Wi+wi, ho*Wo+wo] = Rh[ho,hi] * Rw[wo,wi], so that for a slice x:
    #   (x.reshape(1, Hi*Wi) @ K).reshape(Ho, Wo) == Rh @ x @ Rw^T
    # i.e. exact 2-D bilinear interpolation with align_corners=True.
    rh = _interp_matrix(out_h, in_h)                  # (Ho, Hi)
    rw = _interp_matrix(out_w, in_w)                  # (Wo, Wi)
    k = jnp.einsum("oh,pw->hwop", rh, rw)             # (Hi, Wi, Ho, Wo)
    return k.reshape(in_h * in_w, out_h * out_w)


# ---------------------------------------------------------------------------
# Full forward (mirrors MPIPredictorFull.forward)
# ---------------------------------------------------------------------------
def mpi_predictor_full(src_imgs, params, height, width):
    n, c, hi, wi = src_imgs.shape
    img_flat = src_imgs.reshape(n, c, hi * wi).astype(jnp.float32)

    # 1. image_processor_ + DPT depth -> (N, 1, hi*wi)   (proxy, see TODO)
    depth = depth_proxy(img_flat, params["depth_w"])

    # 2. disp = depth / torch.max(depth): global max over the whole tensor,
    #    passed to the fused kernel as a scalar 1/max (resize is linear).
    inv_max = (1.0 / jnp.max(depth)).reshape(1).astype(jnp.float32)

    # 3.-5. fused: bilinear resize (align_corners=True) of image & disp + MPI head
    k = _bilinear_kron(hi, wi, height, width)
    out = fused_resize_mpi(img_flat, depth, inv_max, k,
                           params["mpi_w"], params["mpi_b"])
    return out.reshape(n, -1, height, width)


if __name__ == "__main__":
    N, C, H_IN, W_IN = 2, 3, 16, 16        # small NCHW input image
    HEIGHT, WIDTH = 32, 32                 # module's (height_, width_)
    NUM_PLANES = 8                         # ckpt['num_planes'] stand-in

    key = jax.random.PRNGKey(0)
    src_imgs = jax.random.uniform(key, (N, C, H_IN, W_IN), jnp.float32)

    # Deterministic synthetic parameters (shapes from the module structure).
    params = {
        "depth_w": jnp.array([0.299, 0.587, 0.114], jnp.float32),            # (C,)
        "mpi_w": (jnp.arange(NUM_PLANES * (C + 1), dtype=jnp.float32)
                  .reshape(NUM_PLANES, C + 1)
                  / (NUM_PLANES * (C + 1)) - 0.5),                           # (P, C+1)
        "mpi_b": jnp.linspace(-0.1, 0.1, NUM_PLANES, dtype=jnp.float32),     # (P,)
    }

    out = mpi_predictor_full(src_imgs, params, HEIGHT, WIDTH)
    jax.block_until_ready(out)
    assert out.shape == (N, NUM_PLANES, HEIGHT, WIDTH), out.shape
    assert out.dtype == jnp.float32
    print("KERNEL_OK")
</pallas_src>

<mosaic_0001>
module attributes {stable_mosaic.version = 11 : i64} {
  func.func @_depth_kernel(%arg0: i32, %arg1: memref<1x3x256xf32, #tpu.memory_space<vmem>>, %arg2: memref<1x3xf32, #tpu.memory_space<vmem>>, %arg3: memref<1x1x256xf32, #tpu.memory_space<vmem>>) attributes {dimension_semantics = [#tpu.dimension_semantics<parallel>], iteration_bounds = array<i64: 2>, scalar_prefetch = 0 : i64, scratch_operands = 0 : i64, tpu.core_type = #tpu.core_type<tc>, window_params = [{transform_indices = @transform_0, window_bounds = array<i64: 1, 3, 256>}, {pipeline_mode = #tpu.pipeline_mode<synchronous>, transform_indices = @transform_1, window_bounds = array<i64: 1, 3>}, {transform_indices = @transform_2, window_bounds = array<i64: 1, 1, 256>}]} {
    %c0 = arith.constant 0 : index
    %c0_0 = arith.constant 0 : index
    %0 = vector.load %arg2[%c0, %c0_0] : memref<1x3xf32, #tpu.memory_space<vmem>>, vector<1x3xf32>
    %c0_1 = arith.constant 0 : index
    %c0_2 = arith.constant 0 : index
    %c0_3 = arith.constant 0 : index
    %1 = vector.load %arg1[%c0_1, %c0_2, %c0_3] : memref<1x3x256xf32, #tpu.memory_space<vmem>>, vector<1x3x256xf32>
    %2 = vector.shape_cast %1 : vector<1x3x256xf32> to vector<3x256xf32>
    %cst = arith.constant dense<0.000000e+00> : vector<1x256xf32>
    %3 = tpu.matmul %0, %2, %cst {dimension_numbers = #tpu.dot_dimension_numbers<[1], [0], [0], [1], [0, 0, 1, 1], [], []>} : vector<1x3xf32>, vector<3x256xf32>, vector<1x256xf32> -> vector<1x256xf32>
    %4 = math.exp %3 : vector<1x256xf32>
    %c0_4 = arith.constant 0 : index
    %c0_5 = arith.constant 0 : index
    %c0_6 = arith.constant 0 : index
    %5 = vector.load %arg3[%c0_4, %c0_5, %c0_6] : memref<1x1x256xf32, #tpu.memory_space<vmem>>, vector<1x1x256xf32>
    %6 = vector.shape_cast %5 : vector<1x1x256xf32> to vector<1x256xf32>
    %7 = vector.shape_cast %4 : vector<1x256xf32> to vector<1x1x256xf32>
    tpu.vector_store %arg3[%c0_4, %c0_5, %c0_6], %7 {strides = array<i32>} : memref<1x1x256xf32, #tpu.memory_space<vmem>>, vector<1x1x256xf32>,
    return
  }
  func.func @transform_0(%arg0: i32) -> (i32, i32, i32) {
    %c0_i32 = arith.constant 0 : i32
    %c0_i32_0 = arith.constant 0 : i32
    %c0_i32_1 = arith.constant 0 : i32
    return %arg0, %c0_i32, %c0_i32_0 : i32, i32, i32
  }
  func.func @transform_1(%arg0: i32) -> (i32, i32) {
    %c0_i32 = arith.constant 0 : i32
    %c0_i32_0 = arith.constant 0 : i32
    %c0_i32_1 = arith.constant 0 : i32
    return %c0_i32, %c0_i32_0 : i32, i32
  }
  func.func @transform_2(%arg0: i32) -> (i32, i32, i32) {
    %c0_i32 = arith.constant 0 : i32
    %c0_i32_0 = arith.constant 0 : i32
    %c0_i32_1 = arith.constant 0 : i32
    return %arg0, %c0_i32, %c0_i32_0 : i32, i32, i32
  }
}

</mosaic_0001>

<llo_original>
// kernel: tpu_custom_call.1
$region0: #{tpu_custom_call.1}
  #allocation0 [shape = 'u32[]', space=smem, size = 0x4, offset = 0x4, fixed_abs, tag = 'smem constant byte address 0x4 - core index']
  #allocation1 [shape = 'u32[144,128]{1,0:T(1,128)}', space=vmem, size = 0x12000, scoped, tag = 'internal scratch']
  %s0 = inlined_call_operand.vmem [shape: f32[2,3,256], index: 0, kind: input, shape index: {}]
  %s1 = inlined_call_operand.vmem [shape: f32[1,3], index: 1, kind: input, shape index: {}]
  %s2 = inlined_call_operand.hbm [shape: f32[2,1,256], index: 2, kind: output, shape index: {}]
  %s3 = sld [smem:[#allocation0]]
  $region41: #{tpu_custom_call.1} parent=0
    _
  %s5 = ssub.s32 1, %s3
  %s6 = scalar_select 0, %s5, %s3
  $region1: #{tpu_custom_call.1} parent=0
    #allocation2 [shape = 'u8[2048]{0}', space=vmem, size = 0x800, scoped, tag = 'output window, operand 0']
    #allocation3 [shape = 's32[2]{0}', space=sflag, size = 0x8, scoped, tag = 'scoped memory for tpu_custom_call.1']
    %7 = vsyncpa [#allocation3], 0
    %s8 = scalar_lea.sflag [#allocation3], 1
    %9 = vsyncpa %s8, 0
    loop: start=0, step=1, limit=4
    $region2: #{tpu_custom_call.1} parent=1 // loop_pre_header
      _
    $region3: #{tpu_custom_call.1} parent=1 // loop_header
      %s11 = sphi 0, %s15
      %p12 = scmp.ge.s32.totalorder %s11, 4
      %s21 = sphi 0, %s23
      %s24 = sphi 0, %s21
      %s25 = sphi 0, %s24
      %s41 = sphi 0, %s25
      %s45 = sphi 0, %s45
      %s47 = sphi 0, %s45
      %s48 = sphi 0, %s47
      %s62 = sphi 0, %s48
      %s68 = sphi 0, %s70
      %s71 = sphi 0, %s68
      %s72 = sphi 0, %s71
      %s88 = sphi 0, %s72
    $region4: #{tpu_custom_call.1} parent=1 // loop_header_branch
      %14 = sbr.rel (%p12) target = $region8
    $region5: #{tpu_custom_call.1} parent=1 // loop_body
      %s16 = ssub.s32 %s11, 1
      %s17 = ssub.s32 %s11, 2
      %s18 = sadd.s32 %s11, 1
      %s19 = ssub.s32 %s11, %s18
      %p20 = scmp.eq.s32.totalorder %s19, 0
      %s22 = sadd.s32 %s21, 1
      %s23 = scalar_select %p20, %s21, %s22
      %p26 = pneg %p20
      %p27 = scmp.eq.s32.totalorder %s11, 1
      %p28 = por %p26, %p27
      %p29 = scmp.ne.s32.totalorder %s21, %s24
      %p30 = scmp.eq.s32.totalorder %s11, 0
      %p31 = por %p29, %p30
      %p32 = scmp.ne.s32.totalorder %s21, %s24
      %p33 = scmp.eq.s32.totalorder %s16, 1
      %p34 = por %p32, %p33
      %p35 = scmp.ne.s32.totalorder %s24, %s25
      %p36 = scmp.eq.s32.totalorder %s16, 0
      %p37 = por %p35, %p36
      %p38 = scmp.ne.s32.totalorder %s24, %s25
      %p39 = scmp.eq.s32.totalorder %s17, 1
      %p40 = por %p38, %p39
      %p42 = scmp.ne.s32.totalorder %s25, %s41
      %p43 = scmp.eq.s32.totalorder %s17, 0
      %p44 = por %p42, %p43
      %s46 = sadd.s32 %s45, 1
      %p49 = scmp.eq.s32.totalorder %s11, 1
      %p50 = scmp.ne.s32.totalorder %s45, %s47
      %p51 = scmp.eq.s32.totalorder %s11, 0
      %p52 = por %p50, %p51
      %p53 = scmp.ne.s32.totalorder %s45, %s47
      %p54 = scmp.eq.s32.totalorder %s16, 1
      %p55 = por %p53, %p54
      %p56 = scmp.ne.s32.totalorder %s47, %s48
      %p57 = scmp.eq.s32.totalorder %s16, 0
      %p58 = por %p56, %p57
      %p59 = scmp.ne.s32.totalorder %s47, %s48
      %p60 = scmp.eq.s32.totalorder %s17, 1
      %p61 = por %p59, %p60
      %p63 = scmp.ne.s32.totalorder %s48, %s62
      %p64 = scmp.eq.s32.totalorder %s17, 0
      %p65 = por %p63, %p64
      %s66 = ssub.s32 %s11, %s18
      %p67 = scmp.eq.s32.totalorder %s66, 0
      %s69 = sadd.s32 %s68, 1
      %s70 = scalar_select %p67, %s68, %s69
      %p73 = pneg %p67
      %p74 = scmp.eq.s32.totalorder %s11, 1
      %p75 = por %p73, %p74
      %p76 = scmp.ne.s32.totalorder %s68, %s71
      %p77 = scmp.eq.s32.totalorder %s11, 0
      %p78 = por %p76, %p77
      %p79 = scmp.ne.s32.totalorder %s68, %s71
      %p80 = scmp.eq.s32.totalorder %s16, 1
      %p81 = por %p79, %p80
      %p82 = scmp.ne.s32.totalorder %s71, %s72
      %p83 = scmp.eq.s32.totalorder %s16, 0
      %p84 = por %p82, %p83
      %p85 = scmp.ne.s32.totalorder %s71, %s72
      %p86 = scmp.eq.s32.totalorder %s17, 1
      %p87 = por %p85, %p86
      %p89 = scmp.ne.s32.totalorder %s72, %s88
      %p90 = scmp.eq.s32.totalorder %s17, 0
      %p91 = por %p89, %p90
      %p92 = scmp.le.s32.totalorder 1, %s11
      %p93 = scmp.lt.s32.totalorder %s11, 3
      %p94 = pnand %p92, %p93
      %p95 = pneg %p94
      // Predicated region
      $region9: #{tpu_custom_call.1} parent=5 // pred_check
        _
      $region10: #{tpu_custom_call.1} parent=5 // pred_check_branch
        %97 = sbr.rel (%p94) target = $region12
      $region11: #{tpu_custom_call.1} parent=5 // pred_region
        %s98 = ssub.s32 %s11, 1
        // Predicated region
        $region13: #{tpu_custom_call.1} parent=11 // pred_check
          %p99 = pneg %p58
        $region14: #{tpu_custom_call.1} parent=11 // pred_check_branch
          %101 = sbr.rel (%p99) target = $region16
        $region15: #{tpu_custom_call.1} parent=11 // pred_region
          _
        $region16: #{tpu_custom_call.1} parent=11 // pred_fallthru
          _
      $region12: #{tpu_custom_call.1} parent=5 // pred_fallthru
        _
      %p102 = scmp.lt.s32.totalorder %s11, 2
      // Predicated region
      $region17: #{tpu_custom_call.1} parent=5 // pred_check
        %p103 = pneg %p102
      $region18: #{tpu_custom_call.1} parent=5 // pred_check_branch
        %105 = sbr.rel (%p103) target = $region20
      $region19: #{tpu_custom_call.1} parent=5 // pred_region
        // Predicated region
        $region21: #{tpu_custom_call.1} parent=19 // pred_check
          %p106 = pneg %p31
        $region22: #{tpu_custom_call.1} parent=19 // pred_check_branch
          %108 = sbr.rel (%p106) target = $region24
        $region23: #{tpu_custom_call.1} parent=19 // pred_region
          %p109 = scmp.lt.s32.totalorder %s11, 1
          %s110 = scalar_select %p109, %s11, 1
          %s111 = smul.addr %s110, 2
          %s112 = smul.addr %s111, 4
          %s113 = scalar_lea.vmem %s0, %s112
        $region24: #{tpu_custom_call.1} parent=19 // pred_fallthru
          _
      $region20: #{tpu_custom_call.1} parent=5 // pred_fallthru
        _
      %p114 = scmp.le.s32.totalorder 1, %s11
      %p115 = scmp.lt.s32.totalorder %s11, 3
      %p116 = pnand %p114, %p115
      %p117 = pneg %p116
      // Predicated region
      $region25: #{tpu_custom_call.1} parent=5 // pred_check
        _
      $region26: #{tpu_custom_call.1} parent=5 // pred_check_branch
        %119 = sbr.rel (%p116) target = $region28
      $region27: #{tpu_custom_call.1} parent=5 // pred_region
        %s120 = ssub.s32 %s11, 1
        %p121 = scmp.lt.s32.totalorder %s16, 1
        %s122 = scalar_select %p121, %s16, 1
        %s123 = smul.addr %s122, 2
        %s124 = smul.addr %s123, 4
        %s125 = scalar_lea.vmem %s0, %s124
        %p126 = pneg %p37
        %p127 = pneg %p34
        %p128 = pneg %p58
        %p129 = pneg %p55
        %p130 = pneg %p84
        %p131 = pneg %p81
        %s132 = sand.u32 %s71, 1
        %s133 = scalar_lea.sflag [#allocation3], %s132
        %s134 = sand.u32 %s71, 1
        %s135 = smul.addr %s134, 2
        %s136 = scalar_lea.vmem [#allocation2], %s135
        %p137 = scmp.lt.s32.totalorder %s16, 1
        %s138 = scalar_select %p137, %s16, 1
        %s139 = smul.addr %s138, 2
        %s140 = smul.addr %s139, 4
        %s141 = scalar_lea.vmem %s0, %s140
        %v142 = vld [vmem:[%s1] sm:$0x1]
        %v143 = vld [vmem:[%s141] sm:$0x77]
        %v145 = vcombine.high %v143, %v143
        %vm146 = vcmask 23552
        %v148 = vsel %vm146, %v142, 0
        %vm150 = vcmask 1042432
        %v151 = vsel %vm150, %v143, 0
        %v153 = vsel %vm150, %v145, 0
        %155 = vmatprep.subr.mxu0 0.0
        %156 = vmatpush1.msra.mxu0 0.0
        %157 = vmatprep.subr.mxu0 0.0
        %158 = vmatpush1.msra.mxu0 0.0
        %159 = vmatprep.subr.mxu0 0.0
        %160 = vmatpush1.msra.mxu0 0.0
        %161 = vmatprep.subr.mxu0 0.0
        %162 = vmatpush1.msra.mxu0 0.0
        %163 = vmatprep.subr.mxu0 0.0
        %164 = vmatpush1.msra.mxu0 0.0
        %165 = vmatprep.subr.mxu0 0.0
        %166 = vmatpush1.msra.mxu0 0.0
        %167 = vmatprep.subr.mxu0 0.0
        %168 = vmatpush1.msra.mxu0 0.0
        %169 = vmatprep.subr.mxu0 0.0
        %170 = vmatpush1.msra.mxu0 0.0
        %171 = vmatprep.subr.mxu0 0.0
        %172 = vmatpush1.msra.mxu0 0.0
        %173 = vmatprep.subr.mxu0 0.0
        %174 = vmatpush1.msra.mxu0 0.0
        %175 = vmatprep.subr.mxu0 0.0
        %176 = vmatpush1.msra.mxu0 0.0
        %177 = vmatprep.subr.mxu0 0.0
        %178 = vmatpush1.msra.mxu0 0.0
        %179 = vmatprep.subr.mxu0 0.0
        %180 = vmatpush1.msra.mxu0 0.0
        %181 = vmatprep.subr.mxu0 0.0
        %182 = vmatpush1.msra.mxu0 0.0
        %183 = vmatprep.subr.mxu0 0.0
        %184 = vmatpush1.msra.mxu0 0.0
        %185 = vmatprep.subr.mxu0 %v153
        %186 = vmatpush1.msra.mxu0 %v151
        %187 = vmatprep.subr.mxu0 0.0
        %188 = vmatpush2.msra.mxu0 0.0
        %189 = vmatprep.subr.mxu0 0.0
        %190 = vmatpush2.msra.mxu0 0.0
        %191 = vmatprep.subr.mxu0 0.0
        %192 = vmatpush2.msra.mxu0 0.0
        %193 = vmatprep.subr.mxu0 0.0
        %194 = vmatpush2.msra.mxu0 0.0
        %195 = vmatprep.subr.mxu0 0.0
        %196 = vmatpush2.msra.mxu0 0.0
        %197 = vmatprep.subr.mxu0 0.0
        %198 = vmatpush2.msra.mxu0 0.0
        %199 = vmatprep.subr.mxu0 0.0
        %200 = vmatpush2.msra.mxu0 0.0
        %201 = vmatprep.subr.mxu0 0.0
        %202 = vmatpush2.msra.mxu0 0.0
        %203 = vmatprep.subr.mxu0 0.0
        %204 = vmatpush2.msra.mxu0 0.0
        %205 = vmatprep.subr.mxu0 0.0
        %206 = vmatpush2.msra.mxu0 0.0
        %207 = vmatprep.subr.mxu0 0.0
        %208 = vmatpush2.msra.mxu0 0.0
        %209 = vmatprep.subr.mxu0 0.0
        %210 = vmatpush2.msra.mxu0 0.0
        %211 = vmatprep.subr.mxu0 0.0
        %212 = vmatpush2.msra.mxu0 0.0
        %213 = vmatprep.subr.mxu0 0.0
        %214 = vmatpush2.msra.mxu0 0.0
        %215 = vmatprep.subr.mxu0 0.0
        %216 = vmatpush2.msra.mxu0 0.0
        %217 = vmatprep.subr.mxu0 0.0
        %218 = vmatpush2.msra.mxu0 0.0
        %219 = vmatprep.mubr.f32.mxu0 0.0
        %220 = vmatmul.mubr.f32.gmra.mxu0 %v148
        %v221 = vpop.f32.mrf.mxu0
        %v222 = vadd.f32 0.0, %v221
        %v223 = vpop.f32.mrf.mxu0
        %v224 = vadd.f32 0.0, %v223
        %225 = vdwg.mxu0
        %v226 = vmul.f32 %v222, 1.442695
        %v227 = vpow.pop %v226
        %v228 = vmul.f32 %v224, 1.442695
        %v229 = vpow.pop %v228
        %v232 = vcombine.low %v227, %v229
        %v234 = vunpack.c.l.s4 1966171168
        %v235 = vunpack.c.0.s8 %v234
        %v236 = vlaneseq
        %v237 = vshrl.u32 %v236, 7
        %v238 = vsub.s32 %v235, %v237
        %v239 = vrot.slane %v232, %v238
        %v241 = vunpack.c.l.s4 1966171168
        %v242 = vunpack.c.0.s8 %v241
        %v243 = vlaneseq
        %v244 = vshrl.u32 %v243, 7
        %v245 = vsub.s32 %v242, %v244
        %v246 = vrot.slane %v239, %v245
        %v248 = vlaneseq
        %vm249 = vcmp.ge.s32.totalorder %v248, 0
        %vm250 = vcmp.lt.s32.totalorder %v248, 256
        %vm251 = vmand %vm249, %vm250
        %252 = vst.msk [vmem:[%s136] sm:$0x3] %vm251, %v246
        %s253 = sand.u32 %s71, 1
        %s254 = scalar_lea.sflag [#allocation3], %s253
        %s255 = sand.u32 %s71, 1
        %s256 = smul.addr %s255, 2
        %s257 = scalar_lea.vmem [#allocation2], %s256
        // Predicated region
        $region29: #{tpu_custom_call.1} parent=27 // pred_check
          %p258 = pneg %p81
        $region30: #{tpu_custom_call.1} parent=27 // pred_check_branch
          %260 = sbr.rel (%p258) target = $region32
        $region31: #{tpu_custom_call.1} parent=27 // pred_region
          %s262 = ssub.s32 32, 32
          %263 = vsyncadd %s254, %s262
          %s264 = smul.addr %s16, 2
          %s265 = smul.addr %s264, 16
          %s266 = scalar_lea.hbm %s2, %s265
          %s268 = sshll.u32 %s257, 4
          %s269 = int_to_ptr.vmem [resolvable:$true] %s268
          %271 = dma.vmem_to_hbm [thread:$0]  %s269, 32, %s266, %s254
        $region32: #{tpu_custom_call.1} parent=27 // pred_fallthru
          _
      $region28: #{tpu_custom_call.1} parent=5 // pred_fallthru
        _
      %p272 = scmp.le.s32.totalorder 2, %s11
      // Predicated region
      $region33: #{tpu_custom_call.1} parent=5 // pred_check
        %p273 = pneg %p272
      $region34: #{tpu_custom_call.1} parent=5 // pred_check_branch
        %275 = sbr.rel (%p273) target = $region36
      $region35: #{tpu_custom_call.1} parent=5 // pred_region
        %s276 = ssub.s32 %s11, 2
        // Predicated region
        $region37: #{tpu_custom_call.1} parent=35 // pred_check
          %p277 = pneg %p87
        $region38: #{tpu_custom_call.1} parent=35 // pred_check_branch
          %279 = sbr.rel (%p277) target = $region40
        $region39: #{tpu_custom_call.1} parent=35 // pred_region
          %s280 = sand.u32 %s72, 1
          %s281 = scalar_lea.sflag [#allocation3], %s280
          %s282 = sand.u32 %s72, 1
          %s283 = smul.addr %s282, 2
          %s284 = scalar_lea.vmem [#allocation2], %s283
          %285 = dma.done %s281, 32
        $region40: #{tpu_custom_call.1} parent=35 // pred_fallthru
          _
      $region36: #{tpu_custom_call.1} parent=5 // pred_fallthru
        _
    $region6: #{tpu_custom_call.1} parent=1 // loop_footer
      %s15 = sadd.s32 1, %s11
    $region7: #{tpu_custom_call.1} parent=1 // loop_footer_branch
      %10 = sbr.rel target = $region3
    $region8: #{tpu_custom_call.1} parent=1 // loop_exit
      _
    %286 = vsyncpa [#allocation3], 1
    %s287 = scalar_lea.sflag [#allocation3], 1
    %288 = vsyncpa %s287, 1

</llo_original>
